<compile_context>
chip_gen: v5e
topology: v5e:2x2
jax: 0.10.0
libtpu: 0.0.40
codegen_flags: <defaults>
</compile_context>

<pallas_src>
import numpy as np
import jax
import jax.numpy as jnp
from jax.experimental import pallas as pl
from jax.experimental.pallas import tpu as pltpu


_SENTINEL = np.iinfo(np.int32).min  # padding category value; never matches real data
_LANES = 128


def _round_up(a, b):
    return (a + b - 1) // b * b


def _vmem_plan():
    """Return (tile_budget_bytes, scoped_vmem_limit_bytes), generation-aware."""
    cap = 128 * 1024 * 1024  # v5e/v6e physical VMEM; conservative fallback
    try:
        info = pltpu.get_tpu_info()
        cap = int(getattr(info, "vmem_capacity_bytes", cap))
    except Exception:
        pass
    # v7x (64 MiB physical) -> 32 MiB limit (its default); v5e/v6e -> 48 MiB.
    limit = min(cap // 2, 48 * 1024 * 1024)
    budget = int(limit * 0.75)  # tile footprint must fit with headroom for Mosaic scratch
    return budget, limit


def _build_plan(categories):
    """Host-side bookkeeping (static).

    Returns:
      G:          (R, 128) int32. One row per (output 128-lane block, owning
                  column) pair: the column's category values placed at their
                  output-lane positions within that block, SENTINEL elsewhere.
      block_plan: tuple over output blocks; block_plan[b] is a tuple of
                  (input_column, g_row) pairs owning lanes in block b.
      T, T_pad:   true / lane-padded number of output features.
    """
    i32 = np.iinfo(np.int32)
    cats_list = []
    for c in categories:
        c = np.asarray(c, np.int64)
        assert c.ndim == 1 and c.size > 0, "each column needs a non-empty 1-D category array"
        assert np.all(c > i32.min) and np.all(c <= i32.max), (
            "category values must be int32-representable (and != INT32_MIN)")
        cats_list.append(c)

    T = int(sum(len(c) for c in cats_list))
    T_pad = max(_LANES, _round_up(T, _LANES))
    n_blocks = T_pad // _LANES

    g_rows = []
    block_plan = [[] for _ in range(n_blocks)]
    off = 0
    for i, c in enumerate(cats_list):
        k = len(c)
        start = off
        while start < off + k:                       # a column may straddle block boundaries
            b = start // _LANES
            blk_lo = b * _LANES
            seg_hi = min(off + k, blk_lo + _LANES)
            row = np.full((_LANES,), _SENTINEL, np.int32)
            row[start - blk_lo:seg_hi - blk_lo] = c[start - off:seg_hi - off].astype(np.int32)
            block_plan[b].append((i, len(g_rows)))
            g_rows.append(row)
            start = seg_hi
        off += k

    G = np.stack(g_rows, axis=0)                     # (R, 128) int32
    return G, tuple(tuple(p) for p in block_plan), T, T_pad


def _make_onehot_kernel(block_plan, tile_n, out_dtype):
    n_blocks = len(block_plan)

    def kernel(x_ref, g_ref, o_ref):
        # x_ref: (tile_n, C)      int32      -- input feature rows
        # g_ref: (R, 128)         int32      -- gated category rows (resident)
        # o_ref: (tile_n, T_pad)  out_dtype
        for b in range(n_blocks):                    # static: one store per 128-lane block
            lo = b * _LANES
            pairs = block_plan[b]
            if not pairs:                            # pure padding block (beyond T)
                o_ref[:, lo:lo + _LANES] = jnp.zeros((tile_n, _LANES), out_dtype)
                continue
            acc = None
            for col, grow in pairs:                  # only columns owning lanes in this block
                # single VPU compare; gating is baked into g_ref via SENTINEL lanes
                hit = x_ref[:, col:col + 1] == g_ref[grow:grow + 1, :]
                acc = hit if acc is None else (acc | hit)   # exact: lanes owned by <=1 column
            o_ref[:, lo:lo + _LANES] = acc.astype(out_dtype)  # convert once at the store

    return kernel


def _choose_tile_n(n_rows_8, t_pad, c, r_rows, out_bytes, budget):
    c_pad = max(_LANES, _round_up(c, _LANES))          # x tile is lane-padded in VMEM
    resident = 2 * _round_up(max(r_rows, 1), 8) * _LANES * 4   # gated cats (count x2, conservative)
    per_row = 2 * (c_pad * 4 + t_pad * out_bytes)      # double-buffered input + output tiles
    avail = max(budget - resident, per_row * 8)
    tile = max(8, min(1024, (avail // per_row) // 8 * 8))
    tile = min(tile, n_rows_8)
    # Keep >= 2 grid steps so both v7x TensorCores get work (harmless elsewhere).
    if n_rows_8 > 8:
        tile = min(tile, max(8, _round_up((n_rows_8 + 1) // 2, 8)))
    return tile


def one_hot_encoder(x_int, categories, *, tile_n=None, out_dtype=jnp.float32):
    """x_int: [N, C] integer array. categories: list of 1-D int arrays (len == C)."""
    x_int = jnp.asarray(x_int)
    if x_int.dtype != jnp.int32:
        # TODO(synk): input values outside int32 range would alias after this cast;
        # the module's int64 semantics are only reproduced for int32-representable data.
        x_int = x_int.astype(jnp.int32)
    N, C = x_int.shape
    assert C == len(categories)

    G_np, block_plan, T, T_pad = _build_plan(categories)
    R = G_np.shape[0]
    out_bytes = jnp.dtype(out_dtype).itemsize
    budget, vmem_limit = _vmem_plan()

    n_rows_8 = _round_up(N, 8)
    if tile_n is None:
        tile_n = _choose_tile_n(n_rows_8, T_pad, C, R, out_bytes, budget)
    assert tile_n % 8 == 0 and tile_n > 0

    N_pad = _round_up(N, tile_n)
    x_padded = x_int if N_pad == N else jnp.pad(x_int, ((0, N_pad - N), (0, 0)))

    # TODO(synk): for very wide encoders (T_pad * tile_n exceeding the VMEM budget
    # even at tile_n=8, or huge C), add a second "parallel" grid axis tiling T_pad
    # with scalar-prefetched per-T-block column ranges instead of the static unroll.
    kernel = _make_onehot_kernel(block_plan, tile_n, out_dtype)

    out = pl.pallas_call(
        kernel,
        out_shape=jax.ShapeDtypeStruct((N_pad, T_pad), out_dtype),
        grid_spec=pltpu.PrefetchScalarGridSpec(
            num_scalar_prefetch=0,
            grid=(N_pad // tile_n,),
            in_specs=[
                pl.BlockSpec((tile_n, C), lambda i: (i, 0)),     # x row tile
                pl.BlockSpec((R, _LANES), lambda i: (0, 0)),     # gated categories (resident)
            ],
            out_specs=pl.BlockSpec((tile_n, T_pad), lambda i: (i, 0)),
        ),
        compiler_params=pltpu.CompilerParams(
            dimension_semantics=("parallel",),
            vmem_limit_bytes=vmem_limit,
        ),
    )(x_padded, jnp.asarray(G_np))

    if N_pad == N and T_pad == T:
        return out                       # no padding was added: skip the extra HBM copy
    return out[:N, :T]


def _reference(x_int, categories):
    # Pure-JAX reference mirroring the PyTorch forward (single-input path).
    x = jnp.asarray(x_int, jnp.int32)
    encoded = []
    for i, cats in enumerate(categories):
        encoded.append(x[:, i:i + 1] == jnp.asarray(np.asarray(cats, np.int32)))
    return jnp.concatenate(encoded, axis=1).astype(jnp.float32)


if __name__ == "__main__":
    key = jax.random.PRNGKey(0)

    # Deterministic "parameters": categories per column (what the module's
    # __init__ would hold in condition_tensors), built in-script.
    categories = [
        np.arange(5, dtype=np.int64),          # column 0: values 0..4
        np.arange(4, dtype=np.int64),          # column 1: values 0..3
        np.arange(6, dtype=np.int64),          # column 2: values 0..5
        np.array([1, 3, 7], dtype=np.int64),   # column 3: values {1,3,7}
    ]

    N = 50  # deliberately not a multiple of the tile -> exercises padding path
    cols = []
    for i, cats in enumerate(categories):
        key, sub = jax.random.split(key)
        # draw from each column's category set (plus occasional unseen value)
        idx = jax.random.randint(sub, (N, 1), 0, len(cats) + 1)
        lut = jnp.asarray(np.concatenate([cats, np.array([99], np.int64)]), jnp.int32)
        cols.append(lut[jnp.clip(idx, 0, len(cats))])
    x = jnp.concatenate(cols, axis=1).astype(jnp.int32)   # [N, num_columns]

    ref = _reference(x, categories)

    # Auto-derived tile.
    out = jax.block_until_ready(one_hot_encoder(x, categories))
    assert out.shape == ref.shape and out.dtype == jnp.float32
    np.testing.assert_allclose(np.asarray(out), np.asarray(ref), atol=0, rtol=0)

    # Small forced tile -> multi-step grid + row padding path.
    out2 = jax.block_until_ready(one_hot_encoder(x, categories, tile_n=16))
    np.testing.assert_allclose(np.asarray(out2), np.asarray(ref), atol=0, rtol=0)

    # Wider encoder: multiple 128-lane output blocks, one column straddling the
    # 128-lane block boundary (exercises the per-block plan).
    categories_wide = [
        np.arange(100, dtype=np.int64) * 3 + 1,            # 100 categories
        np.arange(60, dtype=np.int64) - 7,                 # 60 categories (straddles lane 128)
        np.array([11, 22, 33, 44, 55], dtype=np.int64),    # 5 categories
    ]
    Nw = 37
    wcols = []
    for i, cats in enumerate(categories_wide):
        key, sub = jax.random.split(key)
        idx = jax.random.randint(sub, (Nw, 1), 0, len(cats) + 1)
        lut = jnp.asarray(np.concatenate([cats, np.array([-999], np.int64)]), jnp.int32)
        wcols.append(lut[jnp.clip(idx, 0, len(cats))])
    xw = jnp.concatenate(wcols, axis=1).astype(jnp.int32)
    refw = _reference(xw, categories_wide)
    outw = jax.block_until_ready(one_hot_encoder(xw, categories_wide))
    np.testing.assert_allclose(np.asarray(outw), np.asarray(refw), atol=0, rtol=0)

    print("KERNEL_OK")
</pallas_src>

<mosaic_0001>
module attributes {stable_mosaic.version = 11 : i64} {
  func.func @kernel(%arg0: i32, %arg1: memref<32x4xi32, #tpu.memory_space<vmem>>, %arg2: memref<4x128xi32, #tpu.memory_space<vmem>>, %arg3: memref<32x128xf32, #tpu.memory_space<vmem>>) attributes {dimension_semantics = [#tpu.dimension_semantics<parallel>], iteration_bounds = array<i64: 2>, scalar_prefetch = 0 : i64, scratch_operands = 0 : i64, tpu.core_type = #tpu.core_type<tc>, window_params = [{transform_indices = @transform_0, window_bounds = array<i64: 32, 4>}, {pipeline_mode = #tpu.pipeline_mode<synchronous>, transform_indices = @transform_1, window_bounds = array<i64: 4, 128>}, {transform_indices = @transform_2, window_bounds = array<i64: 32, 128>}]} {
    %c0 = arith.constant 0 : index
    %c0_0 = arith.constant 0 : index
    %0 = vector.load %arg1[%c0, %c0_0] : memref<32x4xi32, #tpu.memory_space<vmem>>, vector<32x1xi32>
    %c0_1 = arith.constant 0 : index
    %c0_2 = arith.constant 0 : index
    %1 = vector.load %arg2[%c0_1, %c0_2] : memref<4x128xi32, #tpu.memory_space<vmem>>, vector<1x128xi32>
    %2 = vector.broadcast %0 : vector<32x1xi32> to vector<32x128xi32>
    %3 = vector.broadcast %1 : vector<1x128xi32> to vector<32x128xi32>
    %4 = arith.cmpi eq, %2, %3 : vector<32x128xi32>
    %c0_3 = arith.constant 0 : index
    %c1 = arith.constant 1 : index
    %5 = vector.load %arg1[%c0_3, %c1] : memref<32x4xi32, #tpu.memory_space<vmem>>, vector<32x1xi32>
    %c1_4 = arith.constant 1 : index
    %c0_5 = arith.constant 0 : index
    %6 = vector.load %arg2[%c1_4, %c0_5] : memref<4x128xi32, #tpu.memory_space<vmem>>, vector<1x128xi32>
    %7 = vector.broadcast %5 : vector<32x1xi32> to vector<32x128xi32>
    %8 = vector.broadcast %6 : vector<1x128xi32> to vector<32x128xi32>
    %9 = arith.cmpi eq, %7, %8 : vector<32x128xi32>
    %10 = arith.ori %4, %9 : vector<32x128xi1>
    %c0_6 = arith.constant 0 : index
    %c2 = arith.constant 2 : index
    %11 = vector.load %arg1[%c0_6, %c2] : memref<32x4xi32, #tpu.memory_space<vmem>>, vector<32x1xi32>
    %c2_7 = arith.constant 2 : index
    %c0_8 = arith.constant 0 : index
    %12 = vector.load %arg2[%c2_7, %c0_8] : memref<4x128xi32, #tpu.memory_space<vmem>>, vector<1x128xi32>
    %13 = vector.broadcast %11 : vector<32x1xi32> to vector<32x128xi32>
    %14 = vector.broadcast %12 : vector<1x128xi32> to vector<32x128xi32>
    %15 = arith.cmpi eq, %13, %14 : vector<32x128xi32>
    %16 = arith.ori %10, %15 : vector<32x128xi1>
    %c0_9 = arith.constant 0 : index
    %c3 = arith.constant 3 : index
    %17 = vector.load %arg1[%c0_9, %c3] : memref<32x4xi32, #tpu.memory_space<vmem>>, vector<32x1xi32>
    %c3_10 = arith.constant 3 : index
    %c0_11 = arith.constant 0 : index
    %18 = vector.load %arg2[%c3_10, %c0_11] : memref<4x128xi32, #tpu.memory_space<vmem>>, vector<1x128xi32>
    %19 = vector.broadcast %17 : vector<32x1xi32> to vector<32x128xi32>
    %20 = vector.broadcast %18 : vector<1x128xi32> to vector<32x128xi32>
    %21 = arith.cmpi eq, %19, %20 : vector<32x128xi32>
    %22 = arith.ori %16, %21 : vector<32x128xi1>
    %23 = arith.extui %22 : vector<32x128xi1> to vector<32x128xi32>
    %24 = arith.sitofp %23 : vector<32x128xi32> to vector<32x128xf32>
    %c0_12 = arith.constant 0 : index
    %c0_13 = arith.constant 0 : index
    %25 = vector.load %arg3[%c0_12, %c0_13] : memref<32x128xf32, #tpu.memory_space<vmem>>, vector<32x128xf32>
    tpu.vector_store %arg3[%c0_12, %c0_13], %24 {strides = array<i32>} : memref<32x128xf32, #tpu.memory_space<vmem>>, vector<32x128xf32>,
    return
  }
  func.func @transform_0(%arg0: i32) -> (i32, i32) {
    %c0_i32 = arith.constant 0 : i32
    %c0_i32_0 = arith.constant 0 : i32
    return %arg0, %c0_i32 : i32, i32
  }
  func.func @transform_1(%arg0: i32) -> (i32, i32) {
    %c0_i32 = arith.constant 0 : i32
    %c0_i32_0 = arith.constant 0 : i32
    %c0_i32_1 = arith.constant 0 : i32
    return %c0_i32, %c0_i32_0 : i32, i32
  }
  func.func @transform_2(%arg0: i32) -> (i32, i32) {
    %c0_i32 = arith.constant 0 : i32
    %c0_i32_0 = arith.constant 0 : i32
    return %arg0, %c0_i32 : i32, i32
  }
}

</mosaic_0001>

<llo_original>
// kernel: tpu_custom_call.1
$region0: #{tpu_custom_call.1}
  #allocation0 [shape = 'u32[]', space=smem, size = 0x4, offset = 0x4, fixed_abs, tag = 'smem constant byte address 0x4 - core index']
  #allocation1 [shape = 'u32[72,128]{1,0:T(1,128)}', space=vmem, size = 0x9000, scoped, tag = 'internal scratch']
  %s0 = inlined_call_operand.vmem [shape: s32[64,4], index: 0, kind: input, shape index: {}]
  %s1 = inlined_call_operand.vmem [shape: s32[4,128], index: 1, kind: input, shape index: {}]
  %s2 = inlined_call_operand.hbm [shape: f32[64,128], index: 2, kind: output, shape index: {}]
  %s3 = sld [smem:[#allocation0]]
  $region41: #{tpu_custom_call.1} parent=0
    _
  %s5 = ssub.s32 1, %s3
  %s6 = scalar_select 0, %s5, %s3
  $region1: #{tpu_custom_call.1} parent=0
    #allocation2 [shape = 'u8[32768]{0}', space=vmem, size = 0x8000, scoped, tag = 'output window, operand 0']
    #allocation3 [shape = 's32[2]{0}', space=sflag, size = 0x8, scoped, tag = 'scoped memory for tpu_custom_call.1']
    %7 = vsyncpa [#allocation3], 0
    %s8 = scalar_lea.sflag [#allocation3], 1
    %9 = vsyncpa %s8, 0
    loop: start=0, step=1, limit=4
    $region2: #{tpu_custom_call.1} parent=1 // loop_pre_header
      _
    $region3: #{tpu_custom_call.1} parent=1 // loop_header
      %s11 = sphi 0, %s15
      %p12 = scmp.ge.s32.totalorder %s11, 4
      %s21 = sphi 0, %s23
      %s24 = sphi 0, %s21
      %s25 = sphi 0, %s24
      %s41 = sphi 0, %s25
      %s45 = sphi 0, %s45
      %s47 = sphi 0, %s45
      %s48 = sphi 0, %s47
      %s62 = sphi 0, %s48
      %s68 = sphi 0, %s70
      %s71 = sphi 0, %s68
      %s72 = sphi 0, %s71
      %s88 = sphi 0, %s72
    $region4: #{tpu_custom_call.1} parent=1 // loop_header_branch
      %14 = sbr.rel (%p12) target = $region8
    $region5: #{tpu_custom_call.1} parent=1 // loop_body
      %s16 = ssub.s32 %s11, 1
      %s17 = ssub.s32 %s11, 2
      %s18 = sadd.s32 %s11, 1
      %s19 = ssub.s32 %s11, %s18
      %p20 = scmp.eq.s32.totalorder %s19, 0
      %s22 = sadd.s32 %s21, 1
      %s23 = scalar_select %p20, %s21, %s22
      %p26 = pneg %p20
      %p27 = scmp.eq.s32.totalorder %s11, 1
      %p28 = por %p26, %p27
      %p29 = scmp.ne.s32.totalorder %s21, %s24
      %p30 = scmp.eq.s32.totalorder %s11, 0
      %p31 = por %p29, %p30
      %p32 = scmp.ne.s32.totalorder %s21, %s24
      %p33 = scmp.eq.s32.totalorder %s16, 1
      %p34 = por %p32, %p33
      %p35 = scmp.ne.s32.totalorder %s24, %s25
      %p36 = scmp.eq.s32.totalorder %s16, 0
      %p37 = por %p35, %p36
      %p38 = scmp.ne.s32.totalorder %s24, %s25
      %p39 = scmp.eq.s32.totalorder %s17, 1
      %p40 = por %p38, %p39
      %p42 = scmp.ne.s32.totalorder %s25, %s41
      %p43 = scmp.eq.s32.totalorder %s17, 0
      %p44 = por %p42, %p43
      %s46 = sadd.s32 %s45, 1
      %p49 = scmp.eq.s32.totalorder %s11, 1
      %p50 = scmp.ne.s32.totalorder %s45, %s47
      %p51 = scmp.eq.s32.totalorder %s11, 0
      %p52 = por %p50, %p51
      %p53 = scmp.ne.s32.totalorder %s45, %s47
      %p54 = scmp.eq.s32.totalorder %s16, 1
      %p55 = por %p53, %p54
      %p56 = scmp.ne.s32.totalorder %s47, %s48
      %p57 = scmp.eq.s32.totalorder %s16, 0
      %p58 = por %p56, %p57
      %p59 = scmp.ne.s32.totalorder %s47, %s48
      %p60 = scmp.eq.s32.totalorder %s17, 1
      %p61 = por %p59, %p60
      %p63 = scmp.ne.s32.totalorder %s48, %s62
      %p64 = scmp.eq.s32.totalorder %s17, 0
      %p65 = por %p63, %p64
      %s66 = ssub.s32 %s11, %s18
      %p67 = scmp.eq.s32.totalorder %s66, 0
      %s69 = sadd.s32 %s68, 1
      %s70 = scalar_select %p67, %s68, %s69
      %p73 = pneg %p67
      %p74 = scmp.eq.s32.totalorder %s11, 1
      %p75 = por %p73, %p74
      %p76 = scmp.ne.s32.totalorder %s68, %s71
      %p77 = scmp.eq.s32.totalorder %s11, 0
      %p78 = por %p76, %p77
      %p79 = scmp.ne.s32.totalorder %s68, %s71
      %p80 = scmp.eq.s32.totalorder %s16, 1
      %p81 = por %p79, %p80
      %p82 = scmp.ne.s32.totalorder %s71, %s72
      %p83 = scmp.eq.s32.totalorder %s16, 0
      %p84 = por %p82, %p83
      %p85 = scmp.ne.s32.totalorder %s71, %s72
      %p86 = scmp.eq.s32.totalorder %s17, 1
      %p87 = por %p85, %p86
      %p89 = scmp.ne.s32.totalorder %s72, %s88
      %p90 = scmp.eq.s32.totalorder %s17, 0
      %p91 = por %p89, %p90
      %p92 = scmp.le.s32.totalorder 1, %s11
      %p93 = scmp.lt.s32.totalorder %s11, 3
      %p94 = pnand %p92, %p93
      %p95 = pneg %p94
      // Predicated region
      $region9: #{tpu_custom_call.1} parent=5 // pred_check
        _
      $region10: #{tpu_custom_call.1} parent=5 // pred_check_branch
        %97 = sbr.rel (%p94) target = $region12
      $region11: #{tpu_custom_call.1} parent=5 // pred_region
        %s98 = ssub.s32 %s11, 1
        // Predicated region
        $region13: #{tpu_custom_call.1} parent=11 // pred_check
          %p99 = pneg %p58
        $region14: #{tpu_custom_call.1} parent=11 // pred_check_branch
          %101 = sbr.rel (%p99) target = $region16
        $region15: #{tpu_custom_call.1} parent=11 // pred_region
          _
        $region16: #{tpu_custom_call.1} parent=11 // pred_fallthru
          _
      $region12: #{tpu_custom_call.1} parent=5 // pred_fallthru
        _
      %p102 = scmp.lt.s32.totalorder %s11, 2
      // Predicated region
      $region17: #{tpu_custom_call.1} parent=5 // pred_check
        %p103 = pneg %p102
      $region18: #{tpu_custom_call.1} parent=5 // pred_check_branch
        %105 = sbr.rel (%p103) target = $region20
      $region19: #{tpu_custom_call.1} parent=5 // pred_region
        // Predicated region
        $region21: #{tpu_custom_call.1} parent=19 // pred_check
          %p106 = pneg %p31
        $region22: #{tpu_custom_call.1} parent=19 // pred_check_branch
          %108 = sbr.rel (%p106) target = $region24
        $region23: #{tpu_custom_call.1} parent=19 // pred_region
          %s109 = smul.u32 4, %s11
          %p110 = scmp.lt.s32.totalorder %s109, 7
          %s111 = scalar_select %p110, %s109, 7
          %s112 = smul.addr %s111, 8
          %s113 = scalar_lea.vmem %s0, %s112
          %s114 = smul.u32 4, %s11
        $region24: #{tpu_custom_call.1} parent=19 // pred_fallthru
          _
      $region20: #{tpu_custom_call.1} parent=5 // pred_fallthru
        _
      %p115 = scmp.le.s32.totalorder 1, %s11
      %p116 = scmp.lt.s32.totalorder %s11, 3
      %p117 = pnand %p115, %p116
      %p118 = pneg %p117
      // Predicated region
      $region25: #{tpu_custom_call.1} parent=5 // pred_check
        _
      $region26: #{tpu_custom_call.1} parent=5 // pred_check_branch
        %120 = sbr.rel (%p117) target = $region28
      $region27: #{tpu_custom_call.1} parent=5 // pred_region
        %s121 = ssub.s32 %s11, 1
        %s122 = smul.u32 4, %s16
        %p123 = scmp.lt.s32.totalorder %s122, 7
        %s124 = scalar_select %p123, %s122, 7
        %s125 = smul.addr %s124, 8
        %s126 = scalar_lea.vmem %s0, %s125
        %p127 = pneg %p37
        %p128 = pneg %p34
        %p129 = pneg %p58
        %p130 = pneg %p55
        %p131 = pneg %p84
        %p132 = pneg %p81
        %s133 = sand.u32 %s71, 1
        %s134 = scalar_lea.sflag [#allocation3], %s133
        %s135 = sand.u32 %s71, 1
        %s136 = smul.addr %s135, 32
        %s137 = scalar_lea.vmem [#allocation2], %s136
        %s138 = smul.u32 4, %s16
        %p139 = scmp.lt.s32.totalorder %s138, 7
        %s140 = scalar_select %p139, %s138, 7
        %s141 = smul.addr %s140, 8
        %s142 = scalar_lea.vmem %s0, %s141
        %s143 = smul.u32 4, %s16
        %s144 = smul.u32 4, %s16
        %v145 = vld [vmem:[%s142] sm:$0xff]
        %v146 = vld [vmem:[%s142 + $0x8] sm:$0xff]
        %v147 = vld [vmem:[%s142 + $0x10] sm:$0xff]
        %v148 = vld [vmem:[%s142 + $0x18] sm:$0xff]
        %v149 = vld [vmem:[%s1] sm:$0x1]
        %150 = vset.pattern.permute.xlu0 0
        %151 = vperm.xlu0 %150, %v145
        %v152 = vpop.permute.xlu0 %151
        %153 = vset.pattern.permute.xlu0 0
        %154 = vperm.xlu0 %153, %v146
        %v155 = vpop.permute.xlu0 %154
        %156 = vset.pattern.permute.xlu0 0
        %157 = vperm.xlu0 %156, %v147
        %v158 = vpop.permute.xlu0 %157
        %159 = vset.pattern.permute.xlu0 0
        %160 = vperm.xlu0 %159, %v148
        %v161 = vpop.permute.xlu0 %160
        %v162 = vperm.slane %v149, 0
        %vm163 = vcmp.eq.s32.totalorder %v152, %v162
        %vm164 = vcmp.eq.s32.totalorder %v155, %v162
        %vm165 = vcmp.eq.s32.totalorder %v158, %v162
        %vm166 = vcmp.eq.s32.totalorder %v161, %v162
        %v167 = vld [vmem:[%s1 + $0x1] sm:$0x1]
        %168 = vset.pattern.permute.xlu0 1
        %169 = vperm.xlu0 %168, %v145
        %v170 = vpop.permute.xlu0 %169
        %171 = vset.pattern.permute.xlu0 1
        %172 = vperm.xlu0 %171, %v146
        %v173 = vpop.permute.xlu0 %172
        %174 = vset.pattern.permute.xlu0 1
        %175 = vperm.xlu0 %174, %v147
        %v176 = vpop.permute.xlu0 %175
        %177 = vset.pattern.permute.xlu0 1
        %178 = vperm.xlu0 %177, %v148
        %v179 = vpop.permute.xlu0 %178
        %v180 = vperm.slane %v167, 0
        %vm181 = vcmp.eq.s32.totalorder %v170, %v180
        %vm182 = vcmp.eq.s32.totalorder %v173, %v180
        %vm183 = vcmp.eq.s32.totalorder %v176, %v180
        %vm184 = vcmp.eq.s32.totalorder %v179, %v180
        %vm185 = vmor %vm163, %vm181
        %vm186 = vmor %vm164, %vm182
        %vm187 = vmor %vm165, %vm183
        %vm188 = vmor %vm166, %vm184
        %v189 = vld [vmem:[%s1 + $0x2] sm:$0x1]
        %190 = vset.pattern.permute.xlu0 2
        %191 = vperm.xlu0 %190, %v145
        %v192 = vpop.permute.xlu0 %191
        %193 = vset.pattern.permute.xlu0 2
        %194 = vperm.xlu0 %193, %v146
        %v195 = vpop.permute.xlu0 %194
        %196 = vset.pattern.permute.xlu0 2
        %197 = vperm.xlu0 %196, %v147
        %v198 = vpop.permute.xlu0 %197
        %199 = vset.pattern.permute.xlu0 2
        %200 = vperm.xlu0 %199, %v148
        %v201 = vpop.permute.xlu0 %200
        %v202 = vperm.slane %v189, 0
        %vm203 = vcmp.eq.s32.totalorder %v192, %v202
        %vm204 = vcmp.eq.s32.totalorder %v195, %v202
        %vm205 = vcmp.eq.s32.totalorder %v198, %v202
        %vm206 = vcmp.eq.s32.totalorder %v201, %v202
        %vm207 = vmor %vm185, %vm203
        %vm208 = vmor %vm186, %vm204
        %vm209 = vmor %vm187, %vm205
        %vm210 = vmor %vm188, %vm206
        %v211 = vld [vmem:[%s1 + $0x3] sm:$0x1]
        %212 = vset.pattern.permute.xlu0 3
        %213 = vperm.xlu0 %212, %v145
        %v214 = vpop.permute.xlu0 %213
        %215 = vset.pattern.permute.xlu0 3
        %216 = vperm.xlu0 %215, %v146
        %v217 = vpop.permute.xlu0 %216
        %218 = vset.pattern.permute.xlu0 3
        %219 = vperm.xlu0 %218, %v147
        %v220 = vpop.permute.xlu0 %219
        %221 = vset.pattern.permute.xlu0 3
        %222 = vperm.xlu0 %221, %v148
        %v223 = vpop.permute.xlu0 %222
        %v224 = vperm.slane %v211, 0
        %vm225 = vcmp.eq.s32.totalorder %v214, %v224
        %vm226 = vcmp.eq.s32.totalorder %v217, %v224
        %vm227 = vcmp.eq.s32.totalorder %v220, %v224
        %vm228 = vcmp.eq.s32.totalorder %v223, %v224
        %vm229 = vmor %vm207, %vm225
        %vm230 = vmor %vm208, %vm226
        %vm231 = vmor %vm209, %vm227
        %vm232 = vmor %vm210, %vm228
        %v233 = vsel %vm229, 1, 0
        %v234 = vsel %vm230, 1, 0
        %v235 = vsel %vm231, 1, 0
        %v236 = vsel %vm232, 1, 0
        %v237 = vcvt.s32.f32 %v233
        %v238 = vcvt.s32.f32 %v234
        %v239 = vcvt.s32.f32 %v235
        %v240 = vcvt.s32.f32 %v236
        %241 = vst [vmem:[%s137] sm:$0xff] %v237
        %242 = vst [vmem:[%s137 + $0x8] sm:$0xff] %v238
        %243 = vst [vmem:[%s137 + $0x10] sm:$0xff] %v239
        %244 = vst [vmem:[%s137 + $0x18] sm:$0xff] %v240
        %s245 = sand.u32 %s71, 1
        %s246 = scalar_lea.sflag [#allocation3], %s245
        %s247 = sand.u32 %s71, 1
        %s248 = smul.addr %s247, 32
        %s249 = scalar_lea.vmem [#allocation2], %s248
        // Predicated region
        $region29: #{tpu_custom_call.1} parent=27 // pred_check
          %p250 = pneg %p81
        $region30: #{tpu_custom_call.1} parent=27 // pred_check_branch
          %252 = sbr.rel (%p250) target = $region32
        $region31: #{tpu_custom_call.1} parent=27 // pred_region
          %s253 = smul.u32 4, %s16
          %255 = vsyncadd %s246, 0
          %s256 = smul.addr %s253, 8
          %s257 = scalar_lea.hbm %s2, %s256
          %s258 = sshll.u32 %s249, 4
          %s259 = int_to_ptr.vmem [resolvable:$true] %s258
          %s260 = sshll.u32 %s257, 4
          %s261 = int_to_ptr.hbm [resolvable:$true] %s260
          %266 = dma.vmem_to_hbm [thread:$0]  %s259, 512, %s261, %s246, 128, 128, 8
        $region32: #{tpu_custom_call.1} parent=27 // pred_fallthru
          _
      $region28: #{tpu_custom_call.1} parent=5 // pred_fallthru
        _
      %p267 = scmp.le.s32.totalorder 2, %s11
      // Predicated region
      $region33: #{tpu_custom_call.1} parent=5 // pred_check
        %p268 = pneg %p267
      $region34: #{tpu_custom_call.1} parent=5 // pred_check_branch
        %270 = sbr.rel (%p268) target = $region36
      $region35: #{tpu_custom_call.1} parent=5 // pred_region
        %s271 = ssub.s32 %s11, 2
        // Predicated region
        $region37: #{tpu_custom_call.1} parent=35 // pred_check
          %p272 = pneg %p87
        $region38: #{tpu_custom_call.1} parent=35 // pred_check_branch
          %274 = sbr.rel (%p272) target = $region40
        $region39: #{tpu_custom_call.1} parent=35 // pred_region
          %s275 = sand.u32 %s72, 1
          %s276 = scalar_lea.sflag [#allocation3], %s275
          %s277 = sand.u32 %s72, 1
          %s278 = smul.addr %s277, 32
          %s279 = scalar_lea.vmem [#allocation2], %s278
          %281 = dma.done %s276, 512
        $region40: #{tpu_custom_call.1} parent=35 // pred_fallthru
          _
      $region36: #{tpu_custom_call.1} parent=5 // pred_fallthru
        _
    $region6: #{tpu_custom_call.1} parent=1 // loop_footer
      %s15 = sadd.s32 1, %s11
    $region7: #{tpu_custom_call.1} parent=1 // loop_footer_branch
      %10 = sbr.rel target = $region3
    $region8: #{tpu_custom_call.1} parent=1 // loop_exit
      _
    %282 = vsyncpa [#allocation3], 1
    %s283 = scalar_lea.sflag [#allocation3], 1
    %284 = vsyncpa %s283, 1

</llo_original>
